<compile_context>
chip_gen: v6e
topology: v6e:2x2x1
jax: 0.10.0
libtpu: 0.0.40
codegen_flags: <defaults>
</compile_context>

<pallas_src>
import functools

import jax
import jax.numpy as jnp
import numpy as np
from jax import lax
from jax.experimental import pallas as pl
from jax.experimental.pallas import tpu as pltpu

EPS = 1e-5
NEG_SLOPE = 0.2
K = 4            # conv kernel size
S = 2            # conv stride
LANE = 128
VMEM_LIMIT = 32 * 1024 * 1024


def _conv_stats_kernel(x_ref, w_ref, z_ref, stats_ref, *, lw, w2, ow, compute_dtype):
    """One image per grid step: LeakyReLU -> one fused-contraction MXU dot -> write
    un-normalized z and accumulate per-core BN sums (sum / sum-of-squares)."""

    @pl.when(pl.program_id(1) == 0)
    def _init():
        stats_ref[...] = jnp.zeros_like(stats_ref)

    x = x_ref[...].astype(jnp.float32)                 # [LF, 4*C_in], phases packed in lanes
    x = jnp.where(x > 0, x, NEG_SLOPE * x)             # LeakyReLU(0.2) in f32 (v5e-safe)
    x = x.astype(compute_dtype)

    # Patch matrix [LW, 16*C_in]: 4 static unit-stride slices (one per (qi,qj) tap-quotient),
    # each already carrying the 4 spatial phases x C_in in its lanes.
    pieces = [x[q * w2 + r: q * w2 + r + lw, :] for q in (0, 1) for r in (0, 1)]
    patch = jnp.concatenate(pieces, axis=-1)

    # Single deep-contraction dot: [LW, 16*C_in] @ [16*C_in, CP] -> f32 accumulate.
    acc = jnp.dot(patch, w_ref[...], preferred_element_type=jnp.float32)

    z_ref[...] = acc.astype(z_ref.dtype)               # un-normalized conv output (no bias:
                                                        # absorbed by BN mean subtraction)

    # Valid-row mask generated in-kernel: row r is valid iff (r % W2) < OW.
    valid = (lax.broadcasted_iota(jnp.int32, acc.shape, 0) % w2) < ow
    accv = jnp.where(valid, acc, 0.0)
    s0 = jnp.sum(accv, axis=0, keepdims=True)           # [1, CP] sum
    s1 = jnp.sum(accv * acc, axis=0, keepdims=True)     # [1, CP] sum of squares
    stats_ref[...] = stats_ref[...] + jnp.concatenate([s0, s1], axis=0)   # one (2,CP) store


def _bn_apply_kernel(z_ref, stats_ref, gamma_ref, beta_ref, o_ref, *, count):
    """Fused BatchNorm affine over a flattened row tile: out = z*scale + shift.
    Merges the per-core partial stats slabs and uses rsqrt (EUP slot)."""
    stats = jnp.sum(stats_ref[...].astype(jnp.float32), axis=0)   # [NC,2,CP] -> [2,CP]
    inv = 1.0 / count                                   # static python float
    mean = stats[0:1, :] * inv                          # [1, CP]
    var = stats[1:2, :] * inv - mean * mean
    scale = gamma_ref[...] * lax.rsqrt(var + EPS)
    shift = beta_ref[...] - mean * scale
    o_ref[...] = (z_ref[...].astype(jnp.float32) * scale + shift).astype(o_ref.dtype)


def _pick_row_tile(total_rows):
    for t in (1024, 512, 256, 128, 64, 32, 16, 8):
        if total_rows % t == 0:
            return t
    return total_rows                                   # full-dim block (always legal)


def unet_skip_connection_eblock4(x, conv_w, conv_b, bn_gamma, bn_beta,
                                 *, compute_dtype=jnp.bfloat16):
    """Forward of UnetSkipConnectionEBlock4 (default: LeakyReLU -> Conv4x4/s2/p0 -> BN).

    x:       [N, outer_nc, H, W]  (NCHW, like PyTorch)
    conv_w:  [inner_nc, outer_nc, 4, 4]
    conv_b:  [inner_nc]            (accepted for API parity; absorbed by batch-stats BN)
    bn_gamma, bn_beta: [inner_nc]
    returns: [N, inner_nc, OH, OW] (NCHW, float32)
    """
    del conv_b  # BatchNorm with batch statistics cancels the conv bias exactly.

    N, C_in, H, W = x.shape
    C_out = conv_w.shape[0]
    assert H % 2 == 0 and W % 2 == 0 and H >= K and W >= K

    H2, W2 = H // 2, W // 2
    OH, OW = H2 - 1, W2 - 1            # valid conv output for K=4, S=2, pad=0
    LW = OH * W2                       # over-wide row count (one junk col per row, masked)
    LF = (H2 + 1) * W2                 # flattened + padded per-image spatial length
    PC = 4 * C_in                      # packed per-offset channel width (phases in lanes)
    KC = K * K * C_in                  # fused contraction depth (= 4 * PC)
    M = N * OH * OW                    # true BatchNorm element count per channel

    # Channel padding: lane-dense 128 padding only pays off when C_out is large; for small
    # channel counts keep minimal padding (accept masked lane tail, avoid write amplification).
    if C_out % LANE == 0:
        CP = C_out
    elif C_out > LANE:
        CP = ((C_out + LANE - 1) // LANE) * LANE
    else:
        CP = C_out

    f32_path = jnp.dtype(compute_dtype) == jnp.dtype(jnp.float32)
    z_dtype = jnp.float32 if f32_path else jnp.bfloat16
    itemsize = jnp.dtype(compute_dtype).itemsize
    z_itemsize = jnp.dtype(z_dtype).itemsize

    # ---- layout plumbing: O(|x|) space-to-depth, no im2col blowup ----------------------
    # NCHW -> NHWC -> [N, H2, W2, (ri,rj,c)] -> [N, H2*W2 (+W2 pad), 4*C_in], cast once so
    # the kernel DMA carries compute_dtype bytes.
    x_nhwc = jnp.transpose(x, (0, 2, 3, 1))
    x_ph = x_nhwc.reshape(N, H2, 2, W2, 2, C_in).transpose(0, 1, 3, 2, 4, 5)
    x_ph = x_ph.reshape(N, H2 * W2, PC)
    x_ph = jnp.pad(x_ph, ((0, 0), (0, W2), (0, 0))).astype(compute_dtype)   # [N, LF, PC]

    # Weights: [C_out, C_in, 4, 4] -> rows ordered (qi, qj, ri, rj, c) to match patch lanes.
    w_t = jnp.transpose(conv_w, (2, 3, 1, 0))                       # (ki, kj, c, o)
    w_t = w_t.reshape(2, 2, 2, 2, C_in, C_out)                      # (qi, ri, qj, rj, c, o)
    w_t = jnp.transpose(w_t, (0, 2, 1, 3, 4, 5)).reshape(KC, C_out)
    w_all = jnp.pad(w_t, ((0, 0), (0, CP - C_out))).astype(compute_dtype)   # [KC, CP]

    g_pad = jnp.pad(bn_gamma.astype(jnp.float32), (0, CP - C_out)).reshape(1, CP)
    b_pad = jnp.pad(bn_beta.astype(jnp.float32), (0, CP - C_out)).reshape(1, CP)

    # Per-core stats split: leading "parallel" axis so v7x's two TensorCores both run pass 1.
    NC = 2 if (N >= 2 and N % 2 == 0) else 1
    NPC = N // NC

    # ---- pass 1: LeakyReLU + conv + per-core BN statistics -----------------------------
    z, stats = pl.pallas_call(
        functools.partial(_conv_stats_kernel, lw=LW, w2=W2, ow=OW,
                          compute_dtype=compute_dtype),
        out_shape=(
            jax.ShapeDtypeStruct((N, LW, CP), z_dtype),     # un-normalized conv output
            jax.ShapeDtypeStruct((NC, 2, CP), jnp.float32), # per-core [sum; sum-of-squares]
        ),
        grid=(NC, NPC),
        in_specs=[
            pl.BlockSpec((None, LF, PC), lambda c, n: (c * NPC + n, 0, 0)),
            pl.BlockSpec((KC, CP), lambda c, n: (0, 0)),
        ],
        out_specs=(
            pl.BlockSpec((None, LW, CP), lambda c, n: (c * NPC + n, 0, 0)),
            pl.BlockSpec((None, 2, CP), lambda c, n: (c, 0, 0)),    # resident per-core slab
        ),
        compiler_params=pltpu.CompilerParams(
            dimension_semantics=("parallel", "arbitrary"),
            vmem_limit_bytes=VMEM_LIMIT),
        cost_estimate=pl.CostEstimate(
            flops=2 * N * LW * KC * CP,
            transcendentals=0,
            bytes_accessed=int(N * LF * PC * itemsize + KC * CP * itemsize
                               + N * LW * CP * z_itemsize + NC * 2 * CP * 4)),
    )(x_ph, w_all)

    # ---- pass 2: fused BN normalize over flattened row tiles ("parallel") --------------
    TOT = N * LW
    TR = _pick_row_tile(TOT)
    z_flat = z.reshape(TOT, CP)

    out_flat = pl.pallas_call(
        functools.partial(_bn_apply_kernel, count=float(M)),
        out_shape=jax.ShapeDtypeStruct((TOT, CP), jnp.float32),
        grid=(TOT // TR,),
        in_specs=[
            pl.BlockSpec((TR, CP), lambda t: (t, 0)),
            pl.BlockSpec((NC, 2, CP), lambda t: (0, 0, 0)),
            pl.BlockSpec((1, CP), lambda t: (0, 0)),
            pl.BlockSpec((1, CP), lambda t: (0, 0)),
        ],
        out_specs=pl.BlockSpec((TR, CP), lambda t: (t, 0)),
        compiler_params=pltpu.CompilerParams(
            dimension_semantics=("parallel",),
            vmem_limit_bytes=VMEM_LIMIT),
        cost_estimate=pl.CostEstimate(
            flops=3 * TOT * CP + 8 * CP,
            transcendentals=CP * (TOT // TR),
            bytes_accessed=int(TOT * CP * (z_itemsize + 4) + NC * 2 * CP * 4 + 2 * CP * 4)),
    )(z_flat, stats, g_pad, b_pad)

    # Drop channel padding + junk column; return NCHW for PyTorch parity.
    # (A channels-last consumer could take the NHWC view and skip the final transpose.)
    out = out_flat.reshape(N, OH, W2, CP)[:, :, :OW, :C_out]
    return jnp.transpose(out, (0, 3, 1, 2))


def _reference(x, conv_w, conv_b, bn_gamma, bn_beta):
    """Pure-JAX reference (matches PyTorch training-mode forward)."""
    y = jnp.where(x > 0, x, NEG_SLOPE * x)
    z = lax.conv_general_dilated(
        y, conv_w, window_strides=(S, S), padding="VALID",
        dimension_numbers=("NCHW", "OIHW", "NCHW"))
    z = z + conv_b.reshape(1, -1, 1, 1)
    mean = jnp.mean(z, axis=(0, 2, 3), keepdims=True)
    var = jnp.mean((z - mean) ** 2, axis=(0, 2, 3), keepdims=True)
    zn = (z - mean) * lax.rsqrt(var + EPS)
    return zn * bn_gamma.reshape(1, -1, 1, 1) + bn_beta.reshape(1, -1, 1, 1)


if __name__ == "__main__":
    key = jax.random.PRNGKey(0)
    k_x, k_w, k_b, k_g, k_be = jax.random.split(key, 5)

    N, outer_nc, inner_nc, Hs, Ws = 2, 4, 8, 16, 16

    x = jax.random.normal(k_x, (N, outer_nc, Hs, Ws), dtype=jnp.float32)
    conv_w = 0.1 * jax.random.normal(k_w, (inner_nc, outer_nc, K, K), dtype=jnp.float32)
    conv_b = 0.1 * jax.random.normal(k_b, (inner_nc,), dtype=jnp.float32)
    bn_gamma = 1.0 + 0.05 * jax.random.normal(k_g, (inner_nc,), dtype=jnp.float32)
    bn_beta = 0.05 * jax.random.normal(k_be, (inner_nc,), dtype=jnp.float32)

    fwd = jax.jit(unet_skip_connection_eblock4, static_argnames=("compute_dtype",))

    ref = jax.block_until_ready(_reference(x, conv_w, conv_b, bn_gamma, bn_beta))

    # Default (bf16 MXU operands, f32 accumulation): loose tolerance.
    out_bf16 = jax.block_until_ready(fwd(x, conv_w, conv_b, bn_gamma, bn_beta))
    np.testing.assert_allclose(np.asarray(out_bf16), np.asarray(ref), rtol=5e-2, atol=5e-2)

    # f32 verification path: tight parity with the reference.
    out_f32 = jax.block_until_ready(
        fwd(x, conv_w, conv_b, bn_gamma, bn_beta, compute_dtype=jnp.float32))
    np.testing.assert_allclose(np.asarray(out_f32), np.asarray(ref), rtol=1e-4, atol=1e-4)

    print("KERNEL_OK")
</pallas_src>

<mosaic_0001>
module attributes {stable_mosaic.version = 11 : i64} {
  func.func @_bn_apply_kernel(%arg0: i32, %arg1: memref<16x8xbf16, #tpu.memory_space<vmem>>, %arg2: memref<2x2x8xf32, #tpu.memory_space<vmem>>, %arg3: memref<1x8xf32, #tpu.memory_space<vmem>>, %arg4: memref<1x8xf32, #tpu.memory_space<vmem>>, %arg5: memref<16x8xf32, #tpu.memory_space<vmem>>) attributes {dimension_semantics = [#tpu.dimension_semantics<parallel>], iteration_bounds = array<i64: 7>, scalar_prefetch = 0 : i64, scratch_operands = 0 : i64, tpu.core_type = #tpu.core_type<tc>, window_params = [{transform_indices = @transform_0, window_bounds = array<i64: 16, 8>}, {pipeline_mode = #tpu.pipeline_mode<synchronous>, transform_indices = @transform_1, window_bounds = array<i64: 2, 2, 8>}, {pipeline_mode = #tpu.pipeline_mode<synchronous>, transform_indices = @transform_2, window_bounds = array<i64: 1, 8>}, {pipeline_mode = #tpu.pipeline_mode<synchronous>, transform_indices = @transform_3, window_bounds = array<i64: 1, 8>}, {transform_indices = @transform_4, window_bounds = array<i64: 16, 8>}]} {
    %c0 = arith.constant 0 : index
    %c0_0 = arith.constant 0 : index
    %c0_1 = arith.constant 0 : index
    %0 = vector.load %arg2[%c0, %c0_0, %c0_1] : memref<2x2x8xf32, #tpu.memory_space<vmem>>, vector<2x2x8xf32>
    %cst = arith.constant dense<0.000000e+00> : vector<2x8xf32>
    %1 = vector.multi_reduction <add>, %0, %cst [0] : vector<2x2x8xf32> to vector<2x8xf32>
    %2 = vector.extract_strided_slice %1 {offsets = [0, 0], sizes = [1, 8], strides = [1, 1]} : vector<2x8xf32> to vector<1x8xf32>
    %cst_2 = arith.constant 0.0102040814 : f32
    %3 = vector.broadcast %cst_2 : f32 to vector<1x8xf32>
    %4 = arith.mulf %2, %3 : vector<1x8xf32>
    %5 = vector.extract_strided_slice %1 {offsets = [1, 0], sizes = [1, 8], strides = [1, 1]} : vector<2x8xf32> to vector<1x8xf32>
    %cst_3 = arith.constant 0.0102040814 : f32
    %6 = vector.broadcast %cst_3 : f32 to vector<1x8xf32>
    %7 = arith.mulf %5, %6 : vector<1x8xf32>
    %8 = arith.mulf %4, %4 : vector<1x8xf32>
    %9 = arith.subf %7, %8 : vector<1x8xf32>
    %c0_4 = arith.constant 0 : index
    %c0_5 = arith.constant 0 : index
    %10 = vector.load %arg3[%c0_4, %c0_5] : memref<1x8xf32, #tpu.memory_space<vmem>>, vector<1x8xf32>
    %cst_6 = arith.constant 9.99999974E-6 : f32
    %11 = vector.broadcast %cst_6 : f32 to vector<1x8xf32>
    %12 = arith.addf %9, %11 : vector<1x8xf32>
    %13 = math.rsqrt %12 : vector<1x8xf32>
    %14 = arith.mulf %10, %13 : vector<1x8xf32>
    %c0_7 = arith.constant 0 : index
    %c0_8 = arith.constant 0 : index
    %15 = vector.load %arg4[%c0_7, %c0_8] : memref<1x8xf32, #tpu.memory_space<vmem>>, vector<1x8xf32>
    %16 = arith.mulf %4, %14 : vector<1x8xf32>
    %17 = arith.subf %15, %16 : vector<1x8xf32>
    %c0_9 = arith.constant 0 : index
    %c0_10 = arith.constant 0 : index
    %18 = vector.load %arg1[%c0_9, %c0_10] : memref<16x8xbf16, #tpu.memory_space<vmem>>, vector<16x8xbf16>
    %19 = arith.extf %18 : vector<16x8xbf16> to vector<16x8xf32>
    %20 = vector.broadcast %14 : vector<1x8xf32> to vector<16x8xf32>
    %21 = arith.mulf %19, %20 : vector<16x8xf32>
    %22 = vector.broadcast %17 : vector<1x8xf32> to vector<16x8xf32>
    %23 = arith.addf %21, %22 : vector<16x8xf32>
    %c0_11 = arith.constant 0 : index
    %c0_12 = arith.constant 0 : index
    %24 = vector.load %arg5[%c0_11, %c0_12] : memref<16x8xf32, #tpu.memory_space<vmem>>, vector<16x8xf32>
    tpu.vector_store %arg5[%c0_11, %c0_12], %23 {strides = array<i32>} : memref<16x8xf32, #tpu.memory_space<vmem>>, vector<16x8xf32>,
    return
  }
  func.func @transform_0(%arg0: i32) -> (i32, i32) {
    %c0_i32 = arith.constant 0 : i32
    %c0_i32_0 = arith.constant 0 : i32
    return %arg0, %c0_i32 : i32, i32
  }
  func.func @transform_1(%arg0: i32) -> (i32, i32, i32) {
    %c0_i32 = arith.constant 0 : i32
    %c0_i32_0 = arith.constant 0 : i32
    %c0_i32_1 = arith.constant 0 : i32
    %c0_i32_2 = arith.constant 0 : i32
    return %c0_i32, %c0_i32_0, %c0_i32_1 : i32, i32, i32
  }
  func.func @transform_2(%arg0: i32) -> (i32, i32) {
    %c0_i32 = arith.constant 0 : i32
    %c0_i32_0 = arith.constant 0 : i32
    %c0_i32_1 = arith.constant 0 : i32
    return %c0_i32, %c0_i32_0 : i32, i32
  }
  func.func @transform_3(%arg0: i32) -> (i32, i32) {
    %c0_i32 = arith.constant 0 : i32
    %c0_i32_0 = arith.constant 0 : i32
    %c0_i32_1 = arith.constant 0 : i32
    return %c0_i32, %c0_i32_0 : i32, i32
  }
  func.func @transform_4(%arg0: i32) -> (i32, i32) {
    %c0_i32 = arith.constant 0 : i32
    %c0_i32_0 = arith.constant 0 : i32
    return %arg0, %c0_i32 : i32, i32
  }
}

module attributes {stable_mosaic.version = 11 : i64} {
  func.func @_conv_stats_kernel(%arg0: i32, %arg1: i32, %arg2: memref<1x72x16xbf16, #tpu.memory_space<vmem>>, %arg3: memref<64x8xbf16, #tpu.memory_space<vmem>>, %arg4: memref<1x56x8xbf16, #tpu.memory_space<vmem>>, %arg5: memref<1x2x8xf32, #tpu.memory_space<vmem>>) attributes {dimension_semantics = [#tpu.dimension_semantics<parallel>, #tpu.dimension_semantics<arbitrary>], iteration_bounds = array<i64: 2, 1>, scalar_prefetch = 0 : i64, scratch_operands = 0 : i64, tpu.core_type = #tpu.core_type<tc>, window_params = [{transform_indices = @transform_0, window_bounds = array<i64: 1, 72, 16>}, {pipeline_mode = #tpu.pipeline_mode<synchronous>, transform_indices = @transform_1, window_bounds = array<i64: 64, 8>}, {transform_indices = @transform_2, window_bounds = array<i64: 1, 56, 8>}, {transform_indices = @transform_3, window_bounds = array<i64: 1, 2, 8>}]} {
    %c0_i32 = arith.constant 0 : i32
    %0 = arith.cmpi eq, %arg1, %c0_i32 : i32
    %1 = arith.extui %0 : i1 to i32
    %c0_i32_0 = arith.constant 0 : i32
    %2 = arith.cmpi ne, %1, %c0_i32_0 : i32
    scf.if %2 {
      %cst_23 = arith.constant 0.000000e+00 : f32
      %56 = vector.broadcast %cst_23 : f32 to vector<2x8xf32>
      %c0_24 = arith.constant 0 : index
      %c0_25 = arith.constant 0 : index
      %c0_26 = arith.constant 0 : index
      %57 = vector.load %arg5[%c0_24, %c0_25, %c0_26] : memref<1x2x8xf32, #tpu.memory_space<vmem>>, vector<1x2x8xf32>
      %58 = vector.shape_cast %57 : vector<1x2x8xf32> to vector<2x8xf32>
      %59 = vector.shape_cast %56 : vector<2x8xf32> to vector<1x2x8xf32>
      tpu.vector_store %arg5[%c0_24, %c0_25, %c0_26], %59 {strides = array<i32>} : memref<1x2x8xf32, #tpu.memory_space<vmem>>, vector<1x2x8xf32>,
    } else {
    }
    %c0 = arith.constant 0 : index
    %c0_1 = arith.constant 0 : index
    %c0_2 = arith.constant 0 : index
    %3 = vector.load %arg2[%c0, %c0_1, %c0_2] : memref<1x72x16xbf16, #tpu.memory_space<vmem>>, vector<1x72x16xbf16>
    %4 = vector.shape_cast %3 : vector<1x72x16xbf16> to vector<72x16xbf16>
    %5 = arith.extf %4 : vector<72x16xbf16> to vector<72x16xf32>
    %cst = arith.constant 0.000000e+00 : f32
    %6 = vector.broadcast %cst : f32 to vector<72x16xf32>
    %7 = arith.cmpf ogt, %5, %6 : vector<72x16xf32>
    %cst_3 = arith.constant 2.000000e-01 : f32
    %8 = vector.broadcast %cst_3 : f32 to vector<72x16xf32>
    %9 = arith.mulf %8, %5 : vector<72x16xf32>
    %10 = arith.select %7, %5, %9 : vector<72x16xi1>, vector<72x16xf32>
    %11 = arith.truncf %10 : vector<72x16xf32> to vector<72x16xbf16>
    %12 = vector.extract_strided_slice %11 {offsets = [0, 0], sizes = [56, 16], strides = [1, 1]} : vector<72x16xbf16> to vector<56x16xbf16>
    %13 = vector.extract_strided_slice %11 {offsets = [1, 0], sizes = [56, 16], strides = [1, 1]} : vector<72x16xbf16> to vector<56x16xbf16>
    %14 = vector.extract_strided_slice %11 {offsets = [8, 0], sizes = [56, 16], strides = [1, 1]} : vector<72x16xbf16> to vector<56x16xbf16>
    %15 = vector.extract_strided_slice %11 {offsets = [9, 0], sizes = [56, 16], strides = [1, 1]} : vector<72x16xbf16> to vector<56x16xbf16>
    %16 = tpu.concatenate %12, %13, %14, %15 in 1 : vector<56x16xbf16>, vector<56x16xbf16>, vector<56x16xbf16>, vector<56x16xbf16> -> vector<56x64xbf16>
    %c0_4 = arith.constant 0 : index
    %c0_5 = arith.constant 0 : index
    %17 = vector.load %arg3[%c0_4, %c0_5] : memref<64x8xbf16, #tpu.memory_space<vmem>>, vector<64x8xbf16>
    %cst_6 = arith.constant dense<0.000000e+00> : vector<56x8xf32>
    %18 = tpu.matmul %16, %17, %cst_6 {dimension_numbers = #tpu.dot_dimension_numbers<[1], [0], [0], [1], [0, 0, 1, 1], [], []>} : vector<56x64xbf16>, vector<64x8xbf16>, vector<56x8xf32> -> vector<56x8xf32>
    %19 = arith.truncf %18 : vector<56x8xf32> to vector<56x8xbf16>
    %c0_7 = arith.constant 0 : index
    %c0_8 = arith.constant 0 : index
    %c0_9 = arith.constant 0 : index
    %20 = vector.load %arg4[%c0_7, %c0_8, %c0_9] : memref<1x56x8xbf16, #tpu.memory_space<vmem>>, vector<1x56x8xbf16>
    %21 = vector.shape_cast %20 : vector<1x56x8xbf16> to vector<56x8xbf16>
    %22 = vector.shape_cast %19 : vector<56x8xbf16> to vector<1x56x8xbf16>
    tpu.vector_store %arg4[%c0_7, %c0_8, %c0_9], %22 {strides = array<i32>} : memref<1x56x8xbf16, #tpu.memory_space<vmem>>, vector<1x56x8xbf16>,
    %23 = tpu.iota {dimensions = array<i32: 0>} : vector<56x8xi32>
    %c8_i32 = arith.constant 8 : i32
    %c0_i32_10 = arith.constant 0 : i32
    %24 = arith.cmpi eq, %c8_i32, %c0_i32_10 : i32
    %c1_i32 = arith.constant 1 : i32
    %25 = arith.select %24, %c1_i32, %c8_i32 : i32
    %26 = vector.broadcast %25 : i32 to vector<56x8xi32>
    %27 = arith.remsi %23, %26 : vector<56x8xi32>
    %c0_i32_11 = arith.constant 0 : i32
    %28 = vector.broadcast %c0_i32_11 : i32 to vector<56x8xi32>
    %29 = arith.cmpi ne, %27, %28 : vector<56x8xi32>
    %c0_i32_12 = arith.constant 0 : i32
    %30 = vector.broadcast %c0_i32_12 : i32 to vector<56x8xi32>
    %31 = arith.cmpi slt, %27, %30 : vector<56x8xi32>
    %c0_i32_13 = arith.constant 0 : i32
    %32 = arith.cmpi slt, %25, %c0_i32_13 : i32
    %33 = vector.broadcast %32 : i1 to vector<56x8xi1>
    %34 = vector.broadcast %33 : vector<56x8xi1> to vector<56x8xi1>
    %35 = arith.xori %31, %34 : vector<56x8xi1>
    %36 = arith.andi %35, %29 : vector<56x8xi1>
    %37 = vector.broadcast %25 : i32 to vector<56x8xi32>
    %38 = arith.addi %27, %37 : vector<56x8xi32>
    %39 = arith.select %36, %38, %27 : vector<56x8xi1>, vector<56x8xi32>
    %c7_i32 = arith.constant 7 : i32
    %40 = vector.broadcast %c7_i32 : i32 to vector<56x8xi32>
    %41 = arith.cmpi slt, %39, %40 : vector<56x8xi32>
    %cst_14 = arith.constant 0.000000e+00 : f32
    %42 = vector.broadcast %cst_14 : f32 to vector<56x8xf32>
    %43 = arith.select %41, %18, %42 : vector<56x8xi1>, vector<56x8xf32>
    %cst_15 = arith.constant dense<0.000000e+00> : vector<8xf32>
    %44 = vector.multi_reduction <add>, %43, %cst_15 [0] : vector<56x8xf32> to vector<8xf32>
    %45 = vector.shape_cast %44 : vector<8xf32> to vector<1x8xf32>
    %46 = arith.mulf %43, %18 : vector<56x8xf32>
    %cst_16 = arith.constant dense<0.000000e+00> : vector<8xf32>
    %47 = vector.multi_reduction <add>, %46, %cst_16 [0] : vector<56x8xf32> to vector<8xf32>
    %48 = vector.shape_cast %47 : vector<8xf32> to vector<1x8xf32>
    %c0_17 = arith.constant 0 : index
    %c0_18 = arith.constant 0 : index
    %c0_19 = arith.constant 0 : index
    %49 = vector.load %arg5[%c0_17, %c0_18, %c0_19] : memref<1x2x8xf32, #tpu.memory_space<vmem>>, vector<1x2x8xf32>
    %50 = vector.shape_cast %49 : vector<1x2x8xf32> to vector<2x8xf32>
    %51 = tpu.concatenate %45, %48 in 0 : vector<1x8xf32>, vector<1x8xf32> -> vector<2x8xf32>
    %52 = arith.addf %50, %51 : vector<2x8xf32>
    %c0_20 = arith.constant 0 : index
    %c0_21 = arith.constant 0 : index
    %c0_22 = arith.constant 0 : index
    %53 = vector.load %arg5[%c0_20, %c0_21, %c0_22] : memref<1x2x8xf32, #tpu.memory_space<vmem>>, vector<1x2x8xf32>
    %54 = vector.shape_cast %53 : vector<1x2x8xf32> to vector<2x8xf32>
    %55 = vector.shape_cast %52 : vector<2x8xf32> to vector<1x2x8xf32>
    tpu.vector_store %arg5[%c0_20, %c0_21, %c0_22], %55 {strides = array<i32>} : memref<1x2x8xf32, #tpu.memory_space<vmem>>, vector<1x2x8xf32>,
    return
  }
  func.func @transform_0(%arg0: i32, %arg1: i32) -> (i32, i32, i32) {
    %c1_i32 = arith.constant 1 : i32
    %0 = arith.muli %arg0, %c1_i32 : i32
    %1 = arith.addi %0, %arg1 : i32
    %c0_i32 = arith.constant 0 : i32
    %c0_i32_0 = arith.constant 0 : i32
    %c0_i32_1 = arith.constant 0 : i32
    return %1, %c0_i32, %c0_i32_0 : i32, i32, i32
  }
  func.func @transform_1(%arg0: i32, %arg1: i32) -> (i32, i32) {
    %c0_i32 = arith.constant 0 : i32
    %c0_i32_0 = arith.constant 0 : i32
    %c0_i32_1 = arith.constant 0 : i32
    return %c0_i32, %c0_i32_0 : i32, i32
  }
  func.func @transform_2(%arg0: i32, %arg1: i32) -> (i32, i32, i32) {
    %c1_i32 = arith.constant 1 : i32
    %0 = arith.muli %arg0, %c1_i32 : i32
    %1 = arith.addi %0, %arg1 : i32
    %c0_i32 = arith.constant 0 : i32
    %c0_i32_0 = arith.constant 0 : i32
    %c0_i32_1 = arith.constant 0 : i32
    return %1, %c0_i32, %c0_i32_0 : i32, i32, i32
  }
  func.func @transform_3(%arg0: i32, %arg1: i32) -> (i32, i32, i32) {
    %c0_i32 = arith.constant 0 : i32
    %c0_i32_0 = arith.constant 0 : i32
    %c0_i32_1 = arith.constant 0 : i32
    return %arg0, %c0_i32, %c0_i32_0 : i32, i32, i32
  }
}

</mosaic_0001>

<llo_original>
// kernel: unet_skip_connection_eblock4.3
$region0: #{unet_skip_connection_eblock4.3}
  #allocation0 [shape = 'u32[]', space=smem, size = 0x4, offset = 0x4, fixed_abs, tag = 'smem constant byte address 0x4 - core index']
  #allocation1 [shape = 'u32[144,128]{1,0:T(1,128)}', space=vmem, size = 0x12000, scoped, tag = 'internal scratch']
  %s0 = inlined_call_operand.vmem [shape: bf16[112,8], index: 0, kind: input, shape index: {}]
  %s1 = inlined_call_operand.vmem [shape: f32[2,2,8], index: 1, kind: input, shape index: {}]
  %s2 = inlined_call_operand.vmem [shape: f32[1,8], index: 2, kind: input, shape index: {}]
  %s3 = inlined_call_operand.vmem [shape: f32[1,8], index: 3, kind: input, shape index: {}]
  %s4 = inlined_call_operand.vmem [shape: f32[112,8], index: 4, kind: output, shape index: {}]
  %s5 = sld [smem:[#allocation0]]
  $region49: #{unet_skip_connection_eblock4.3} parent=0
    _
  %s7 = ssub.s32 1, %s5
  %s8 = scalar_select 0, %s7, %s5
  loop: start=0, step=1, limit=9
  $region2: #{unet_skip_connection_eblock4.3} parent=0 // loop_pre_header
    _
  $region3: #{unet_skip_connection_eblock4.3} parent=0 // loop_header
    %s10 = sphi 0, %s14
    %p11 = scmp.ge.s32.totalorder %s10, 9
    %s20 = sphi 0, %s22
    %s23 = sphi 0, %s20
    %s24 = sphi 0, %s23
    %s40 = sphi 0, %s24
    %s44 = sphi 0, %s44
    %s46 = sphi 0, %s44
    %s47 = sphi 0, %s46
    %s61 = sphi 0, %s47
    %s65 = sphi 0, %s65
    %s67 = sphi 0, %s65
    %s68 = sphi 0, %s67
    %s82 = sphi 0, %s68
    %s86 = sphi 0, %s86
    %s88 = sphi 0, %s86
    %s89 = sphi 0, %s88
    %s103 = sphi 0, %s89
    %s109 = sphi 0, %s111
    %s112 = sphi 0, %s109
    %s113 = sphi 0, %s112
    %s129 = sphi 0, %s113
  $region4: #{unet_skip_connection_eblock4.3} parent=0 // loop_header_branch
    %13 = sbr.rel (%p11) target = $region8
  $region5: #{unet_skip_connection_eblock4.3} parent=0 // loop_body
    %s15 = ssub.s32 %s10, 1
    %s16 = ssub.s32 %s10, 2
    %s17 = sadd.s32 %s10, 1
    %s18 = ssub.s32 %s10, %s17
    %p19 = scmp.eq.s32.totalorder %s18, 0
    %s21 = sadd.s32 %s20, 1
    %s22 = scalar_select %p19, %s20, %s21
    %p25 = pneg %p19
    %p26 = scmp.eq.s32.totalorder %s10, 6
    %p27 = por %p25, %p26
    %p28 = scmp.ne.s32.totalorder %s20, %s23
    %p29 = scmp.eq.s32.totalorder %s10, 0
    %p30 = por %p28, %p29
    %p31 = scmp.ne.s32.totalorder %s20, %s23
    %p32 = scmp.eq.s32.totalorder %s15, 6
    %p33 = por %p31, %p32
    %p34 = scmp.ne.s32.totalorder %s23, %s24
    %p35 = scmp.eq.s32.totalorder %s15, 0
    %p36 = por %p34, %p35
    %p37 = scmp.ne.s32.totalorder %s23, %s24
    %p38 = scmp.eq.s32.totalorder %s16, 6
    %p39 = por %p37, %p38
    %p41 = scmp.ne.s32.totalorder %s24, %s40
    %p42 = scmp.eq.s32.totalorder %s16, 0
    %p43 = por %p41, %p42
    %s45 = sadd.s32 %s44, 1
    %p48 = scmp.eq.s32.totalorder %s10, 6
    %p49 = scmp.ne.s32.totalorder %s44, %s46
    %p50 = scmp.eq.s32.totalorder %s10, 0
    %p51 = por %p49, %p50
    %p52 = scmp.ne.s32.totalorder %s44, %s46
    %p53 = scmp.eq.s32.totalorder %s15, 6
    %p54 = por %p52, %p53
    %p55 = scmp.ne.s32.totalorder %s46, %s47
    %p56 = scmp.eq.s32.totalorder %s15, 0
    %p57 = por %p55, %p56
    %p58 = scmp.ne.s32.totalorder %s46, %s47
    %p59 = scmp.eq.s32.totalorder %s16, 6
    %p60 = por %p58, %p59
    %p62 = scmp.ne.s32.totalorder %s47, %s61
    %p63 = scmp.eq.s32.totalorder %s16, 0
    %p64 = por %p62, %p63
    %s66 = sadd.s32 %s65, 1
    %p69 = scmp.eq.s32.totalorder %s10, 6
    %p70 = scmp.ne.s32.totalorder %s65, %s67
    %p71 = scmp.eq.s32.totalorder %s10, 0
    %p72 = por %p70, %p71
    %p73 = scmp.ne.s32.totalorder %s65, %s67
    %p74 = scmp.eq.s32.totalorder %s15, 6
    %p75 = por %p73, %p74
    %p76 = scmp.ne.s32.totalorder %s67, %s68
    %p77 = scmp.eq.s32.totalorder %s15, 0
    %p78 = por %p76, %p77
    %p79 = scmp.ne.s32.totalorder %s67, %s68
    %p80 = scmp.eq.s32.totalorder %s16, 6
    %p81 = por %p79, %p80
    %p83 = scmp.ne.s32.totalorder %s68, %s82
    %p84 = scmp.eq.s32.totalorder %s16, 0
    %p85 = por %p83, %p84
    %s87 = sadd.s32 %s86, 1
    %p90 = scmp.eq.s32.totalorder %s10, 6
    %p91 = scmp.ne.s32.totalorder %s86, %s88
    %p92 = scmp.eq.s32.totalorder %s10, 0
    %p93 = por %p91, %p92
    %p94 = scmp.ne.s32.totalorder %s86, %s88
    %p95 = scmp.eq.s32.totalorder %s15, 6
    %p96 = por %p94, %p95
    %p97 = scmp.ne.s32.totalorder %s88, %s89
    %p98 = scmp.eq.s32.totalorder %s15, 0
    %p99 = por %p97, %p98
    %p100 = scmp.ne.s32.totalorder %s88, %s89
    %p101 = scmp.eq.s32.totalorder %s16, 6
    %p102 = por %p100, %p101
    %p104 = scmp.ne.s32.totalorder %s89, %s103
    %p105 = scmp.eq.s32.totalorder %s16, 0
    %p106 = por %p104, %p105
    %s107 = ssub.s32 %s10, %s17
    %p108 = scmp.eq.s32.totalorder %s107, 0
    %s110 = sadd.s32 %s109, 1
    %s111 = scalar_select %p108, %s109, %s110
    %p114 = pneg %p108
    %p115 = scmp.eq.s32.totalorder %s10, 6
    %p116 = por %p114, %p115
    %p117 = scmp.ne.s32.totalorder %s109, %s112
    %p118 = scmp.eq.s32.totalorder %s10, 0
    %p119 = por %p117, %p118
    %p120 = scmp.ne.s32.totalorder %s109, %s112
    %p121 = scmp.eq.s32.totalorder %s15, 6
    %p122 = por %p120, %p121
    %p123 = scmp.ne.s32.totalorder %s112, %s113
    %p124 = scmp.eq.s32.totalorder %s15, 0
    %p125 = por %p123, %p124
    %p126 = scmp.ne.s32.totalorder %s112, %s113
    %p127 = scmp.eq.s32.totalorder %s16, 6
    %p128 = por %p126, %p127
    %p130 = scmp.ne.s32.totalorder %s113, %s129
    %p131 = scmp.eq.s32.totalorder %s16, 0
    %p132 = por %p130, %p131
    %p133 = scmp.le.s32.totalorder 1, %s10
    %p134 = scmp.lt.s32.totalorder %s10, 8
    %p135 = pnand %p133, %p134
    %p136 = pneg %p135
    // Predicated region
    $region9: #{unet_skip_connection_eblock4.3} parent=5 // pred_check
      _
    $region10: #{unet_skip_connection_eblock4.3} parent=5 // pred_check_branch
      %138 = sbr.rel (%p135) target = $region12
    $region11: #{unet_skip_connection_eblock4.3} parent=5 // pred_region
      %s139 = ssub.s32 %s10, 1
      // Predicated region
      $region13: #{unet_skip_connection_eblock4.3} parent=11 // pred_check
        %p140 = pneg %p57
      $region14: #{unet_skip_connection_eblock4.3} parent=11 // pred_check_branch
        %142 = sbr.rel (%p140) target = $region16
      $region15: #{unet_skip_connection_eblock4.3} parent=11 // pred_region
        _
      $region16: #{unet_skip_connection_eblock4.3} parent=11 // pred_fallthru
        _
      // Predicated region
      $region17: #{unet_skip_connection_eblock4.3} parent=11 // pred_check
        %p143 = pneg %p78
      $region18: #{unet_skip_connection_eblock4.3} parent=11 // pred_check_branch
        %145 = sbr.rel (%p143) target = $region20
      $region19: #{unet_skip_connection_eblock4.3} parent=11 // pred_region
        _
      $region20: #{unet_skip_connection_eblock4.3} parent=11 // pred_fallthru
        _
      // Predicated region
      $region21: #{unet_skip_connection_eblock4.3} parent=11 // pred_check
        %p146 = pneg %p99
      $region22: #{unet_skip_connection_eblock4.3} parent=11 // pred_check_branch
        %148 = sbr.rel (%p146) target = $region24
      $region23: #{unet_skip_connection_eblock4.3} parent=11 // pred_region
        _
      $region24: #{unet_skip_connection_eblock4.3} parent=11 // pred_fallthru
        _
    $region12: #{unet_skip_connection_eblock4.3} parent=5 // pred_fallthru
      _
    %p149 = scmp.lt.s32.totalorder %s10, 7
    // Predicated region
    $region25: #{unet_skip_connection_eblock4.3} parent=5 // pred_check
      %p150 = pneg %p149
    $region26: #{unet_skip_connection_eblock4.3} parent=5 // pred_check_branch
      %152 = sbr.rel (%p150) target = $region28
    $region27: #{unet_skip_connection_eblock4.3} parent=5 // pred_region
      // Predicated region
      $region29: #{unet_skip_connection_eblock4.3} parent=27 // pred_check
        %p153 = pneg %p30
      $region30: #{unet_skip_connection_eblock4.3} parent=27 // pred_check_branch
        %155 = sbr.rel (%p153) target = $region32
      $region31: #{unet_skip_connection_eblock4.3} parent=27 // pred_region
        %s156 = smul.u32 2, %s10
        %p157 = scmp.lt.s32.totalorder %s156, 13
        %s158 = scalar_select %p157, %s156, 13
        %s159 = smul.addr %s158, 4
        %s160 = scalar_lea.vmem %s0, %s159
        %s161 = smul.u32 2, %s10
      $region32: #{unet_skip_connection_eblock4.3} parent=27 // pred_fallthru
        _
    $region28: #{unet_skip_connection_eblock4.3} parent=5 // pred_fallthru
      _
    %p162 = scmp.le.s32.totalorder 1, %s10
    %p163 = scmp.lt.s32.totalorder %s10, 8
    %p164 = pnand %p162, %p163
    %p165 = pneg %p164
    // Predicated region
    $region33: #{unet_skip_connection_eblock4.3} parent=5 // pred_check
      _
    $region34: #{unet_skip_connection_eblock4.3} parent=5 // pred_check_branch
      %167 = sbr.rel (%p164) target = $region36
    $region35: #{unet_skip_connection_eblock4.3} parent=5 // pred_region
      %s168 = ssub.s32 %s10, 1
      %s169 = smul.u32 2, %s15
      %p170 = scmp.lt.s32.totalorder %s169, 13
      %s171 = scalar_select %p170, %s169, 13
      %s172 = smul.addr %s171, 4
      %s173 = scalar_lea.vmem %s0, %s172
      %p174 = pneg %p36
      %p175 = pneg %p33
      %p176 = pneg %p57
      %p177 = pneg %p54
      %p178 = pneg %p78
      %p179 = pneg %p75
      %p180 = pneg %p99
      %p181 = pneg %p96
      %p182 = pneg %p125
      %p183 = pneg %p122
      %s184 = smul.u32 2, %s15
      %p185 = scmp.lt.s32.totalorder %s184, 13
      %s186 = scalar_select %p185, %s184, 13
      %s187 = smul.addr %s186, 8
      %s188 = scalar_lea.vmem %s4, %s187
      %s189 = smul.u32 2, %s15
      %p190 = scmp.lt.s32.totalorder %s189, 13
      %s191 = scalar_select %p190, %s189, 13
      %s192 = smul.addr %s191, 4
      %s193 = scalar_lea.vmem %s0, %s192
      %s194 = smul.u32 2, %s15
      %s195 = smul.u32 2, %s15
      %p196 = scmp.lt.s32.totalorder %s195, 13
      %s197 = scalar_select %p196, %s195, 13
      %s198 = smul.addr %s197, 8
      %s199 = scalar_lea.vmem %s4, %s198
      %s200 = smul.u32 2, %s15
      %v201 = vld [vmem:[%s1] sm:$0x3]
      %v202 = vld [vmem:[%s1 + $0x2] sm:$0x3]
      %vm203 = vcmask 58368
      %v204 = vsel %vm203, %v201, 0.0
      %v205 = vsel %vm203, %v202, 0.0
      %v206 = vadd.f32 %v204, %v205
      %v207 = vmul.f32 %v206, 0.010204081
      %v208 = vmul.f32 %v207, %v207
      %v210 = vrot.slane %v208, 7
      %v212 = vsub.f32 %v207, %v210
      %v213 = vld [vmem:[%s2] sm:$0x1]
      %v214 = vadd.f32 %v212, 1e-05
      %v215 = vrsqrt.pop %v214
      %v218 = vunpack.c.l.s4 1966171168
      %v219 = vunpack.c.0.s8 %v218
      %v220 = vlaneseq
      %v221 = vshrl.u32 %v220, 7
      %v222 = vsub.s32 %v219, %v221
      %v223 = vrot.slane %v215, %v222
      %v224 = vcombine.high %v223, %v223
      %v226 = vunpack.c.l.s4 1966171168
      %v227 = vunpack.c.0.s8 %v226
      %v228 = vlaneseq
      %v229 = vshrl.u32 %v228, 7
      %v230 = vsub.s32 %v227, %v229
      %v231 = vrot.slane %v224, %v230
      %v233 = vmul.f32 %v213, %v231
      %v234 = vld [vmem:[%s3] sm:$0x1]
      %v235 = vmul.f32 %v207, %v233
      %v236 = vsub.f32 %v234, %v235
      %v237 = vld [vmem:[%s193] sm:$0xf]
      %v238 = vld [vmem:[%s193 + $0x4] sm:$0xf]
      %v239 = vunpack.c.l.bf16 %v237
      %v240 = vunpack.c.l.bf16 %v238
      %v242 = vlaneseq
      %v243 = vshrl.u32 %v242, 7
      %v244 = vsub.s32 0, %v243
      %v245 = vrot.slane %v233, %v244
      %v247 = vmul.f32 %v239, %v245
      %v248 = vmul.f32 %v240, %v245
      %v250 = vlaneseq
      %v251 = vshrl.u32 %v250, 7
      %v252 = vsub.s32 0, %v251
      %v253 = vrot.slane %v236, %v252
      %v255 = vadd.f32 %v247, %v253
      %v256 = vadd.f32 %v248, %v253
      %vm257 = vcmask 64512
      %258 = vst.msk [vmem:[%s199] sm:$0xff] %vm257, %v255
      %259 = vst.msk [vmem:[%s199 + $0x8] sm:$0xff] %vm257, %v256
      %s260 = smul.u32 2, %s15
      %p261 = scmp.lt.s32.totalorder %s260, 13
      %s262 = scalar_select %p261, %s260, 13
      %s263 = smul.addr %s262, 8
      %s264 = scalar_lea.vmem %s4, %s263
      // Predicated region
      $region37: #{unet_skip_connection_eblock4.3} parent=35 // pred_check
        %p265 = pneg %p122
      $region38: #{unet_skip_connection_eblock4.3} parent=35 // pred_check_branch
        %267 = sbr.rel (%p265) target = $region40
      $region39: #{unet_skip_connection_eblock4.3} parent=35 // pred_region
        %s268 = smul.u32 2, %s15
      $region40: #{unet_skip_connection_eblock4.3} parent=35 // pred_fallthru
        _
    $region36: #{unet_skip_connection_eblock4.3} parent=5 // pred_fallthru
      _
    %p269 = scmp.le.s32.totalorder 2, %s10
    // Predicated region
    $region41: #{unet_skip_connection_eblock4.3} parent=5 // pred_check
      %p270 = pneg %p269
    $region42: #{unet_skip_connection_eblock4.3} parent=5 // pred_check_branch
      %272 = sbr.rel (%p270) target = $region44
    $region43: #{unet_skip_connection_eblock4.3} parent=5 // pred_region
      %s273 = ssub.s32 %s10, 2
      // Predicated region
      $region45: #{unet_skip_connection_eblock4.3} parent=43 // pred_check
        %p274 = pneg %p128
      $region46: #{unet_skip_connection_eblock4.3} parent=43 // pred_check_branch
        %276 = sbr.rel (%p274) target = $region48
      $region47: #{unet_skip_connection_eblock4.3} parent=43 // pred_region
        %s277 = smul.u32 2, %s16
        %p278 = scmp.lt.s32.totalorder %s277, 13
        %s279 = scalar_select %p278, %s277, 13
        %s280 = smul.addr %s279, 8
        %s281 = scalar_lea.vmem %s4, %s280
      $region48: #{unet_skip_connection_eblock4.3} parent=43 // pred_fallthru
        _
    $region44: #{unet_skip_connection_eblock4.3} parent=5 // pred_fallthru
      _
  $region6: #{unet_skip_connection_eblock4.3} parent=0 // loop_footer
    %s14 = sadd.s32 1, %s10
  $region7: #{unet_skip_connection_eblock4.3} parent=0 // loop_footer_branch
    %9 = sbr.rel target = $region3
  $region8: #{unet_skip_connection_eblock4.3} parent=0 // loop_exit
    _

// kernel: unet_skip_connection_eblock4.2
$region0: #{unet_skip_connection_eblock4.2}
  #allocation0 [shape = 'u32[]', space=smem, size = 0x4, offset = 0x4, fixed_abs, tag = 'smem constant byte address 0x4 - core index']
  #allocation1 [shape = 'u32[144,128]{1,0:T(1,128)}', space=vmem, size = 0x12000, scoped, tag = 'internal scratch']
  %s0 = inlined_call_operand.vmem [shape: bf16[2,72,16], index: 0, kind: input, shape index: {}]
  %s1 = inlined_call_operand.vmem [shape: bf16[64,8], index: 1, kind: input, shape index: {}]
  %s2 = inlined_call_operand.vmem [shape: bf16[2,56,8], index: 2, kind: output, shape index: {0}]
  %s3 = inlined_call_operand.vmem [shape: f32[2,2,8], index: 3, kind: output, shape index: {1}]
  %4 = xla_tuple %s2, %s3
  %s5 = sld [smem:[#allocation0]]
  $region53: #{unet_skip_connection_eblock4.2} parent=0
    _
  %s7 = ssub.s32 1, %s5
  %s8 = scalar_select 0, %s7, %s5
  loop: start=0, step=1, limit=4
  $region2: #{unet_skip_connection_eblock4.2} parent=0 // loop_pre_header
    _
  $region3: #{unet_skip_connection_eblock4.2} parent=0 // loop_header
    %s10 = sphi 0, %s14
    %p11 = scmp.ge.s32.totalorder %s10, 4
    %s17 = sphi 0, %s29
    %s18 = sphi 0, %s25
    %s19 = sphi 0, %s17
    %s20 = sphi 0, %s18
    %s21 = sphi 0, %s19
    %s22 = sphi 0, %s20
    %s34 = sphi 0, %s36
    %s37 = sphi 0, %s34
    %s38 = sphi 0, %s37
    %s54 = sphi 0, %s38
    %s58 = sphi 0, %s58
    %s60 = sphi 0, %s58
    %s61 = sphi 0, %s60
    %s75 = sphi 0, %s61
    %s83 = sphi 0, %s85
    %s86 = sphi 0, %s83
    %s87 = sphi 0, %s86
    %s103 = sphi 0, %s87
    %s109 = sphi 0, %s111
    %s112 = sphi 0, %s109
    %s113 = sphi 0, %s112
    %s129 = sphi 0, %s113
  $region4: #{unet_skip_connection_eblock4.2} parent=0 // loop_header_branch
    %13 = sbr.rel (%p11) target = $region8
  $region5: #{unet_skip_connection_eblock4.2} parent=0 // loop_body
    %s15 = ssub.s32 %s10, 1
    %s16 = ssub.s32 %s10, 2
    %s23 = sadd.s32 1, %s18
    %p24 = scmp.ge.s32.totalorder %s23, 1
    %s25 = scalar_select %p24, 0, %s23
    %s26 = sadd.s32 1, %s17
    %s27 = scalar_select %p24, %s26, %s17
    %p28 = scmp.ge.s32.totalorder %s27, 2
    %s29 = scalar_select %p28, 0, %s27
    %s30 = sadd.s32 %s17, %s18
    %s31 = sadd.s32 %s29, %s25
    %s32 = ssub.s32 %s30, %s31
    %p33 = scmp.eq.s32.totalorder %s32, 0
    %s35 = sadd.s32 %s34, 1
    %s36 = scalar_select %p33, %s34, %s35
    %p39 = pneg %p33
    %p40 = scmp.eq.s32.totalorder %s10, 1
    %p41 = por %p39, %p40
    %p42 = scmp.ne.s32.totalorder %s34, %s37
    %p43 = scmp.eq.s32.totalorder %s10, 0
    %p44 = por %p42, %p43
    %p45 = scmp.ne.s32.totalorder %s34, %s37
    %p46 = scmp.eq.s32.totalorder %s15, 1
    %p47 = por %p45, %p46
    %p48 = scmp.ne.s32.totalorder %s37, %s38
    %p49 = scmp.eq.s32.totalorder %s15, 0
    %p50 = por %p48, %p49
    %p51 = scmp.ne.s32.totalorder %s37, %s38
    %p52 = scmp.eq.s32.totalorder %s16, 1
    %p53 = por %p51, %p52
    %p55 = scmp.ne.s32.totalorder %s38, %s54
    %p56 = scmp.eq.s32.totalorder %s16, 0
    %p57 = por %p55, %p56
    %s59 = sadd.s32 %s58, 1
    %p62 = scmp.eq.s32.totalorder %s10, 1
    %p63 = scmp.ne.s32.totalorder %s58, %s60
    %p64 = scmp.eq.s32.totalorder %s10, 0
    %p65 = por %p63, %p64
    %p66 = scmp.ne.s32.totalorder %s58, %s60
    %p67 = scmp.eq.s32.totalorder %s15, 1
    %p68 = por %p66, %p67
    %p69 = scmp.ne.s32.totalorder %s60, %s61
    %p70 = scmp.eq.s32.totalorder %s15, 0
    %p71 = por %p69, %p70
    %p72 = scmp.ne.s32.totalorder %s60, %s61
    %p73 = scmp.eq.s32.totalorder %s16, 1
    %p74 = por %p72, %p73
    %p76 = scmp.ne.s32.totalorder %s61, %s75
    %p77 = scmp.eq.s32.totalorder %s16, 0
    %p78 = por %p76, %p77
    %s79 = sadd.s32 %s17, %s18
    %s80 = sadd.s32 %s29, %s25
    %s81 = ssub.s32 %s79, %s80
    %p82 = scmp.eq.s32.totalorder %s81, 0
    %s84 = sadd.s32 %s83, 1
    %s85 = scalar_select %p82, %s83, %s84
    %p88 = pneg %p82
    %p89 = scmp.eq.s32.totalorder %s10, 1
    %p90 = por %p88, %p89
    %p91 = scmp.ne.s32.totalorder %s83, %s86
    %p92 = scmp.eq.s32.totalorder %s10, 0
    %p93 = por %p91, %p92
    %p94 = scmp.ne.s32.totalorder %s83, %s86
    %p95 = scmp.eq.s32.totalorder %s15, 1
    %p96 = por %p94, %p95
    %p97 = scmp.ne.s32.totalorder %s86, %s87
    %p98 = scmp.eq.s32.totalorder %s15, 0
    %p99 = por %p97, %p98
    %p100 = scmp.ne.s32.totalorder %s86, %s87
    %p101 = scmp.eq.s32.totalorder %s16, 1
    %p102 = por %p100, %p101
    %p104 = scmp.ne.s32.totalorder %s87, %s103
    %p105 = scmp.eq.s32.totalorder %s16, 0
    %p106 = por %p104, %p105
    %s107 = ssub.s32 %s17, %s29
    %p108 = scmp.eq.s32.totalorder %s107, 0
    %s110 = sadd.s32 %s109, 1
    %s111 = scalar_select %p108, %s109, %s110
    %p114 = pneg %p108
    %p115 = scmp.eq.s32.totalorder %s10, 1
    %p116 = por %p114, %p115
    %p117 = scmp.ne.s32.totalorder %s109, %s112
    %p118 = scmp.eq.s32.totalorder %s10, 0
    %p119 = por %p117, %p118
    %p120 = scmp.ne.s32.totalorder %s109, %s112
    %p121 = scmp.eq.s32.totalorder %s15, 1
    %p122 = por %p120, %p121
    %p123 = scmp.ne.s32.totalorder %s112, %s113
    %p124 = scmp.eq.s32.totalorder %s15, 0
    %p125 = por %p123, %p124
    %p126 = scmp.ne.s32.totalorder %s112, %s113
    %p127 = scmp.eq.s32.totalorder %s16, 1
    %p128 = por %p126, %p127
    %p130 = scmp.ne.s32.totalorder %s113, %s129
    %p131 = scmp.eq.s32.totalorder %s16, 0
    %p132 = por %p130, %p131
    %p133 = scmp.le.s32.totalorder 1, %s10
    %p134 = scmp.lt.s32.totalorder %s10, 3
    %p135 = pnand %p133, %p134
    %p136 = pneg %p135
    // Predicated region
    $region9: #{unet_skip_connection_eblock4.2} parent=5 // pred_check
      _
    $region10: #{unet_skip_connection_eblock4.2} parent=5 // pred_check_branch
      %138 = sbr.rel (%p135) target = $region12
    $region11: #{unet_skip_connection_eblock4.2} parent=5 // pred_region
      %s139 = ssub.s32 %s10, 1
      // Predicated region
      $region13: #{unet_skip_connection_eblock4.2} parent=11 // pred_check
        %p140 = pneg %p71
      $region14: #{unet_skip_connection_eblock4.2} parent=11 // pred_check_branch
        %142 = sbr.rel (%p140) target = $region16
      $region15: #{unet_skip_connection_eblock4.2} parent=11 // pred_region
        _
      $region16: #{unet_skip_connection_eblock4.2} parent=11 // pred_fallthru
        _
    $region12: #{unet_skip_connection_eblock4.2} parent=5 // pred_fallthru
      _
    %p143 = scmp.lt.s32.totalorder %s10, 2
    // Predicated region
    $region17: #{unet_skip_connection_eblock4.2} parent=5 // pred_check
      %p144 = pneg %p143
    $region18: #{unet_skip_connection_eblock4.2} parent=5 // pred_check_branch
      %146 = sbr.rel (%p144) target = $region20
    $region19: #{unet_skip_connection_eblock4.2} parent=5 // pred_region
      // Predicated region
      $region21: #{unet_skip_connection_eblock4.2} parent=19 // pred_check
        %p147 = pneg %p44
      $region22: #{unet_skip_connection_eblock4.2} parent=19 // pred_check_branch
        %149 = sbr.rel (%p147) target = $region24
      $region23: #{unet_skip_connection_eblock4.2} parent=19 // pred_region
        %s150 = sadd.s32 %s17, %s18
        %p151 = scmp.lt.s32.totalorder %s150, 1
        %s152 = scalar_select %p151, %s150, 1
        %s153 = smul.addr %s152, 9
        %s154 = smul.addr %s153, 4
        %s155 = scalar_lea.vmem %s0, %s154
        %s156 = sadd.s32 %s17, %s18
      $region24: #{unet_skip_connection_eblock4.2} parent=19 // pred_fallthru
        _
    $region20: #{unet_skip_connection_eblock4.2} parent=5 // pred_fallthru
      _
    %p157 = scmp.le.s32.totalorder 1, %s10
    %p158 = scmp.lt.s32.totalorder %s10, 3
    %p159 = pnand %p157, %p158
    %p160 = pneg %p159
    // Predicated region
    $region25: #{unet_skip_connection_eblock4.2} parent=5 // pred_check
      _
    $region26: #{unet_skip_connection_eblock4.2} parent=5 // pred_check_branch
      %162 = sbr.rel (%p159) target = $region28
    $region27: #{unet_skip_connection_eblock4.2} parent=5 // pred_region
      %s163 = ssub.s32 %s10, 1
      %s164 = sadd.s32 %s19, %s20
      %p165 = scmp.lt.s32.totalorder %s164, 1
      %s166 = scalar_select %p165, %s164, 1
      %s167 = smul.addr %s166, 9
      %s168 = smul.addr %s167, 4
      %s169 = scalar_lea.vmem %s0, %s168
      %p170 = pneg %p50
      %p171 = pneg %p47
      %p172 = pneg %p71
      %p173 = pneg %p68
      %p174 = pneg %p99
      %p175 = pneg %p96
      %s176 = sadd.s32 %s19, %s20
      %p177 = scmp.lt.s32.totalorder %s176, 1
      %s178 = scalar_select %p177, %s176, 1
      %s179 = smul.addr %s178, 7
      %s180 = smul.addr %s179, 4
      %s181 = scalar_lea.vmem %s2, %s180
      %p182 = pneg %p125
      %p183 = pneg %p122
      %p184 = scmp.lt.s32.totalorder %s19, 1
      %s185 = scalar_select %p184, %s19, 1
      %s186 = smul.addr %s185, 2
      %s187 = scalar_lea.vmem %s3, %s186
      %s188 = sadd.s32 %s19, %s20
      %p189 = scmp.lt.s32.totalorder %s188, 1
      %s190 = scalar_select %p189, %s188, 1
      %s191 = smul.addr %s190, 9
      %s192 = smul.addr %s191, 4
      %s193 = scalar_lea.vmem %s0, %s192
      %s194 = sadd.s32 %s19, %s20
      %s195 = sadd.s32 %s19, %s20
      %p196 = scmp.lt.s32.totalorder %s195, 1
      %s197 = scalar_select %p196, %s195, 1
      %s198 = smul.addr %s197, 7
      %s199 = smul.addr %s198, 4
      %s200 = scalar_lea.vmem %s2, %s199
      %s201 = sadd.s32 %s19, %s20
      %p202 = scmp.lt.s32.totalorder %s19, 1
      %s203 = scalar_select %p202, %s19, 1
      %s204 = smul.addr %s203, 2
      %s205 = scalar_lea.vmem %s3, %s204
      %p207 = scmp.eq.s32.totalorder %s20, 0
      // Predicated region
      $region29: #{unet_skip_connection_eblock4.2} parent=27 // pred_check
        %p208 = pneg %p207
      $region30: #{unet_skip_connection_eblock4.2} parent=27 // pred_check_branch
        %210 = sbr.rel (%p208) target = $region32
      $region31: #{unet_skip_connection_eblock4.2} parent=27 // pred_region
        %vm211 = vcmask 58368
        %212 = vst.msk [vmem:[%s205] sm:$0x3] %vm211, 0.0
      $region32: #{unet_skip_connection_eblock4.2} parent=27 // pred_fallthru
        _
      %v213 = vld [vmem:[%s193] sm:$0xf]
      %v214 = vld [vmem:[%s193 + $0x4] sm:$0xf]
      %v215 = vld [vmem:[%s193 + $0x8] sm:$0xf]
      %v216 = vld [vmem:[%s193 + $0xc] sm:$0xf]
      %v217 = vld [vmem:[%s193 + $0x10] sm:$0xf]
      %v218 = vld [vmem:[%s193 + $0x14] sm:$0xf]
      %v219 = vld [vmem:[%s193 + $0x18] sm:$0xf]
      %v220 = vld [vmem:[%s193 + $0x1c] sm:$0xf]
      %v221 = vld [vmem:[%s193 + $0x20] sm:$0xf]
      %v222 = vunpack.c.l.bf16 %v213
      %v223 = vunpack.c.l.bf16 %v214
      %v224 = vunpack.c.l.bf16 %v215
      %v225 = vunpack.c.l.bf16 %v216
      %v226 = vunpack.c.l.bf16 %v217
      %v227 = vunpack.c.l.bf16 %v218
      %v228 = vunpack.c.l.bf16 %v219
      %v229 = vunpack.c.l.bf16 %v220
      %v230 = vunpack.c.l.bf16 %v221
      %vm231 = vcmp.gt.f32.partialorder %v222, 0.0
      %vm232 = vcmp.gt.f32.partialorder %v223, 0.0
      %vm233 = vcmp.gt.f32.partialorder %v224, 0.0
      %vm234 = vcmp.gt.f32.partialorder %v225, 0.0
      %vm235 = vcmp.gt.f32.partialorder %v226, 0.0
      %vm236 = vcmp.gt.f32.partialorder %v227, 0.0
      %vm237 = vcmp.gt.f32.partialorder %v228, 0.0
      %vm238 = vcmp.gt.f32.partialorder %v229, 0.0
      %vm239 = vcmp.gt.f32.partialorder %v230, 0.0
      %v240 = vmul.f32 %v222, 0.2
      %v241 = vmul.f32 %v223, 0.2
      %v242 = vmul.f32 %v224, 0.2
      %v243 = vmul.f32 %v225, 0.2
      %v244 = vmul.f32 %v226, 0.2
      %v245 = vmul.f32 %v227, 0.2
      %v246 = vmul.f32 %v228, 0.2
      %v247 = vmul.f32 %v229, 0.2
      %v248 = vmul.f32 %v230, 0.2
      %v249 = vsel %vm231, %v222, %v240
      %v250 = vsel %vm232, %v223, %v241
      %v251 = vsel %vm233, %v224, %v242
      %v252 = vsel %vm234, %v225, %v243
      %v253 = vsel %vm235, %v226, %v244
      %v254 = vsel %vm236, %v227, %v245
      %v255 = vsel %vm237, %v228, %v246
      %v256 = vsel %vm238, %v229, %v247
      %v257 = vsel %vm239, %v230, %v248
      %v258 = vpack.c.bf16 %v250, %v249
      %v259 = vpack.c.bf16 %v252, %v251
      %v260 = vpack.c.bf16 %v254, %v253
      %v261 = vpack.c.bf16 %v256, %v255
      %v262 = vpack.c.bf16 %v257, %v257
      %vm263 = vsmask.f32 7424
      %v265 = vshrl.u32 %v258, 16
      %v267 = vshll.u32 %v258, 16
      %v269 = vrot.slane %v267, 1
      %v270 = vor.u32 %v265, %v269
      %v272 = vshll.u32 %v259, 16
      %v274 = vrot.slane %v272, 1
      %v275 = vsel %vm263, %v270, %v274
      %v276 = vshrl.u32 %v259, 16
      %v278 = vor.u32 %v276, %v274
      %v280 = vshll.u32 %v260, 16
      %v282 = vrot.slane %v280, 1
      %v283 = vsel %vm263, %v278, %v282
      %v284 = vshrl.u32 %v260, 16
      %v286 = vor.u32 %v284, %v282
      %v288 = vshll.u32 %v261, 16
      %v290 = vrot.slane %v288, 1
      %v291 = vsel %vm263, %v286, %v290
      %v292 = vshrl.u32 %v261, 16
      %v294 = vor.u32 %v292, %v290
      %295 = vrot.lane.b32.xlu0 %v275, 16
      %v296 = vpop.permute.xlu0 %295
      %297 = vrot.lane.b32.xlu0 %v283, 16
      %v298 = vpop.permute.xlu0 %297
      %299 = vrot.lane.b32.xlu0 %v291, 16
      %v300 = vpop.permute.xlu0 %299
      %301 = vrot.lane.b32.xlu0 %v294, 16
      %v302 = vpop.permute.xlu0 %301
      %vm307 = vcmask 1043456
      %v308 = vrot.slane %v258, 4
      %v309 = vrot.slane %v259, 4
      %v310 = vsel %vm307, %v308, %v309
      %v311 = vrot.slane %v260, 4
      %v312 = vsel %vm307, %v309, %v311
      %v313 = vrot.slane %v261, 4
      %v314 = vsel %vm307, %v311, %v313
      %315 = vrot.lane.b32.xlu0 %v310, 32
      %v316 = vpop.permute.xlu0 %315
      %317 = vrot.lane.b32.xlu0 %v312, 32
      %v318 = vpop.permute.xlu0 %317
      %319 = vrot.lane.b32.xlu0 %v314, 32
      %v320 = vpop.permute.xlu0 %319
      %321 = vrot.lane.b32.xlu0 %v313, 32
      %v322 = vpop.permute.xlu0 %321
      %vm323 = vsmask.f32 3328
      %v324 = vrot.slane %v265, 4
      %v325 = vrot.slane %v267, 5
      %v326 = vor.u32 %v324, %v325
      %v327 = vrot.slane %v276, 4
      %v328 = vrot.slane %v272, 5
      %v329 = vor.u32 %v327, %v328
      %v330 = vsel %vm323, %v326, %v329
      %v331 = vrot.slane %v284, 4
      %v332 = vrot.slane %v280, 5
      %v333 = vor.u32 %v331, %v332
      %v334 = vsel %vm323, %v329, %v333
      %v335 = vrot.slane %v292, 4
      %v336 = vrot.slane %v288, 5
      %v337 = vor.u32 %v335, %v336
      %v338 = vsel %vm323, %v333, %v337
      %v340 = vshll.u32 %v262, 16
      %v342 = vrot.slane %v340, 5
      %v343 = vsel %vm323, %v337, %v342
      %344 = vrot.lane.b32.xlu0 %v330, 48
      %v345 = vpop.permute.xlu0 %344
      %346 = vrot.lane.b32.xlu0 %v334, 48
      %v347 = vpop.permute.xlu0 %346
      %348 = vrot.lane.b32.xlu0 %v338, 48
      %v349 = vpop.permute.xlu0 %348
      %350 = vrot.lane.b32.xlu0 %v343, 48
      %v351 = vpop.permute.xlu0 %350
      %vm352 = vcmask 130048
      %v354 = vsel %vm352, %v258, %v296
      %v356 = vsel %vm352, %v259, %v298
      %v358 = vsel %vm352, %v260, %v300
      %v360 = vsel %vm352, %v261, %v302
      %vm361 = vcmask 261120
      %v363 = vsel %vm361, %v354, %v316
      %v365 = vsel %vm361, %v356, %v318
      %v367 = vsel %vm361, %v358, %v320
      %v369 = vsel %vm361, %v360, %v322
      %vm370 = vcmask 392192
      %v372 = vsel %vm370, %v363, %v345
      %v374 = vsel %vm370, %v365, %v347
      %v376 = vsel %vm370, %v367, %v349
      %v378 = vsel %vm370, %v369, %v351
      %v379 = vld [vmem:[%s1] sm:$0xf]
      %v380 = vld [vmem:[%s1 + $0x4] sm:$0xf]
      %v381 = vld [vmem:[%s1 + $0x8] sm:$0xf]
      %v382 = vld [vmem:[%s1 + $0xc] sm:$0xf]
      %v383 = vld [vmem:[%s1 + $0x10] sm:$0xf]
      %v384 = vld [vmem:[%s1 + $0x14] sm:$0xf]
      %v385 = vld [vmem:[%s1 + $0x18] sm:$0xf]
      %v386 = vld [vmem:[%s1 + $0x1c] sm:$0xf]
      %v395 = vunpack.c.l.b16 %v379
      %v396 = vunpack.c.l.b16 %v380
      %v397 = vunpack.c.l.b16 %v381
      %v398 = vunpack.c.l.b16 %v382
      %v399 = vunpack.c.l.b16 %v383
      %v400 = vunpack.c.l.b16 %v384
      %v401 = vunpack.c.l.b16 %v385
      %v402 = vunpack.c.l.b16 %v386
      %v403 = vpack.c.b16 %v396, %v395
      %v404 = vpack.c.b16 %v398, %v397
      %v405 = vpack.c.b16 %v400, %v399
      %v406 = vpack.c.b16 %v402, %v401
      %vm411 = vcmask 523264
      %v412 = vsel %vm411, %v372, 0
      %v414 = vsel %vm411, %v374, 0
      %v416 = vsel %vm411, %v376, 0
      %v418 = vsel %vm411, %v378, 0
      %420 = vmatprep.subr.bf16.mxu0 0
      %421 = vmatpush1.bf16.msra.mxu0 0
      %422 = vmatprep.subr.bf16.mxu0 0
      %423 = vmatpush1.bf16.msra.mxu0 0
      %424 = vmatprep.subr.bf16.mxu0 0
      %425 = vmatpush1.bf16.msra.mxu0 0
      %426 = vmatprep.subr.bf16.mxu0 0
      %427 = vmatpush1.bf16.msra.mxu0 0
      %428 = vmatprep.subr.bf16.mxu0 0
      %429 = vmatpush1.bf16.msra.mxu0 %v406
      %430 = vmatprep.subr.bf16.mxu0 0
      %431 = vmatpush1.bf16.msra.mxu0 %v405
      %432 = vmatprep.subr.bf16.mxu0 0
      %433 = vmatpush1.bf16.msra.mxu0 %v404
      %434 = vmatprep.subr.bf16.mxu0 0
      %435 = vmatpush1.bf16.msra.mxu0 %v403
      %436 = vmatprep.subr.bf16.mxu0 0
      %437 = vmatpush2.bf16.msra.mxu0 0
      %438 = vmatprep.subr.bf16.mxu0 0
      %439 = vmatpush2.bf16.msra.mxu0 0
      %440 = vmatprep.subr.bf16.mxu0 0
      %441 = vmatpush2.bf16.msra.mxu0 0
      %442 = vmatprep.subr.bf16.mxu0 0
      %443 = vmatpush2.bf16.msra.mxu0 0
      %444 = vmatprep.subr.bf16.mxu0 0
      %445 = vmatpush2.bf16.msra.mxu0 0
      %446 = vmatprep.subr.bf16.mxu0 0
      %447 = vmatpush2.bf16.msra.mxu0 0
      %448 = vmatprep.subr.bf16.mxu0 0
      %449 = vmatpush2.bf16.msra.mxu0 0
      %450 = vmatprep.subr.bf16.mxu0 0
      %451 = vmatpush2.bf16.msra.mxu0 0
      %452 = vmatprep.mubr.bf16.mxu0 0
      %453 = vmatmul.mubr.bf16.gmra.mxu0 %v412
      %v454 = vpop.f32.mrf.mxu0
      %v455 = vadd.f32 0.0, %v454
      %v456 = vpop.f32.mrf.mxu0
      %v457 = vpop.f32.mrf.mxu0
      %v458 = vadd.f32 0.0, %v457
      %v459 = vpop.f32.mrf.mxu0
      %460 = vmatprep.mubr.bf16.mxu0 0
      %461 = vmatmul.mubr.bf16.gmra.mxu0 %v414
      %v462 = vpop.f32.mrf.mxu0
      %v463 = vadd.f32 0.0, %v462
      %v464 = vpop.f32.mrf.mxu0
      %v465 = vpop.f32.mrf.mxu0
      %v466 = vadd.f32 0.0, %v465
      %v467 = vpop.f32.mrf.mxu0
      %468 = vmatprep.mubr.bf16.mxu0 0
      %469 = vmatmul.mubr.bf16.gmra.mxu0 %v416
      %v470 = vpop.f32.mrf.mxu0
      %v471 = vadd.f32 0.0, %v470
      %v472 = vpop.f32.mrf.mxu0
      %v473 = vpop.f32.mrf.mxu0
      %v474 = vadd.f32 0.0, %v473
      %v475 = vpop.f32.mrf.mxu0
      %476 = vmatprep.mubr.bf16.mxu0 0
      %477 = vmatmul.mubr.bf16.gmra.mxu0 %v418
      %v478 = vpop.f32.mrf.mxu0
      %v479 = vadd.f32 0.0, %v478
      %v480 = vpop.f32.mrf.mxu0
      %v481 = vpop.f32.mrf.mxu0
      %v482 = vpop.f32.mrf.mxu0
      %483 = vdwg.mxu0
      %v484 = vpack.c.bf16 %v458, %v455
      %v485 = vpack.c.bf16 %v466, %v463
      %v486 = vpack.c.bf16 %v474, %v471
      %v487 = vpack.c.bf16 %v479, %v479
      %v492 = vunpack.c.l.b16 %v484
      %v493 = vunpack.c.h.b16 %v484
      %v494 = vunpack.c.l.b16 %v485
      %v495 = vunpack.c.h.b16 %v485
      %v496 = vunpack.c.l.b16 %v486
      %v497 = vunpack.c.h.b16 %v486
      %v498 = vunpack.c.l.b16 %v487
      %v499 = vpack.c.b16 %v492, %v492
      %v500 = vpack.c.b16 %v493, %v493
      %v501 = vpack.c.b16 %v494, %v494
      %v502 = vpack.c.b16 %v495, %v495
      %v503 = vpack.c.b16 %v496, %v496
      %v504 = vpack.c.b16 %v497, %v497
      %v505 = vpack.c.b16 %v498, %v498
      %vm513 = vcmask 60416
      %514 = vst.msk [vmem:[%s200] sm:$0xf] %vm513, %v499
      %515 = vst.msk [vmem:[%s200 + $0x4] sm:$0xf] %vm513, %v500
      %516 = vst.msk [vmem:[%s200 + $0x8] sm:$0xf] %vm513, %v501
      %517 = vst.msk [vmem:[%s200 + $0xc] sm:$0xf] %vm513, %v502
      %518 = vst.msk [vmem:[%s200 + $0x10] sm:$0xf] %vm513, %v503
      %519 = vst.msk [vmem:[%s200 + $0x14] sm:$0xf] %vm513, %v504
      %520 = vst.msk [vmem:[%s200 + $0x18] sm:$0xf] %vm513, %v505
      %v521 = vlaneseq
      %v522 = vshrl.u32 %v521, 7
      %v523 = vadd.s32 %v522, 8
      %v524 = vadd.s32 %v522, 16
      %v525 = vadd.s32 %v522, 24
      %v526 = vadd.s32 %v522, 32
      %v527 = vadd.s32 %v522, 40
      %v528 = vadd.s32 %v522, 48
      %vm529 = vcmp.lt.s32.totalorder %v522, 0
      %v530 = vsub.s32 0, %v522
      %v531 = vsel %vm529, %v530, %v522
      %v532 = vshrl.u32 %v531, 3
      %v533 = vand.u32 %v531, 7
      %v534 = vsub.s32 0, %v533
      %v535 = vsel %vm529, %v534, %v533
      %vm536 = vcmp.lt.s32.totalorder %v523, 0
      %v537 = vsub.s32 0, %v523
      %v538 = vsel %vm536, %v537, %v523
      %v539 = vshrl.u32 %v538, 3
      %v540 = vand.u32 %v538, 7
      %v541 = vsub.s32 0, %v540
      %v542 = vsel %vm536, %v541, %v540
      %vm543 = vcmp.lt.s32.totalorder %v524, 0
      %v544 = vsub.s32 0, %v524
      %v545 = vsel %vm543, %v544, %v524
      %v546 = vshrl.u32 %v545, 3
      %v547 = vand.u32 %v545, 7
      %v548 = vsub.s32 0, %v547
      %v549 = vsel %vm543, %v548, %v547
      %vm550 = vcmp.lt.s32.totalorder %v525, 0
      %v551 = vsub.s32 0, %v525
      %v552 = vsel %vm550, %v551, %v525
      %v553 = vshrl.u32 %v552, 3
      %v554 = vand.u32 %v552, 7
      %v555 = vsub.s32 0, %v554
      %v556 = vsel %vm550, %v555, %v554
      %vm557 = vcmp.lt.s32.totalorder %v526, 0
      %v558 = vsub.s32 0, %v526
      %v559 = vsel %vm557, %v558, %v526
      %v560 = vshrl.u32 %v559, 3
      %v561 = vand.u32 %v559, 7
      %v562 = vsub.s32 0, %v561
      %v563 = vsel %vm557, %v562, %v561
      %vm564 = vcmp.lt.s32.totalorder %v527, 0
      %v565 = vsub.s32 0, %v527
      %v566 = vsel %vm564, %v565, %v527
      %v567 = vshrl.u32 %v566, 3
      %v568 = vand.u32 %v566, 7
      %v569 = vsub.s32 0, %v568
      %v570 = vsel %vm564, %v569, %v568
      %vm571 = vcmp.lt.s32.totalorder %v528, 0
      %v572 = vsub.s32 0, %v528
      %v573 = vsel %vm571, %v572, %v528
      %v574 = vshrl.u32 %v573, 3
      %v575 = vand.u32 %v573, 7
      %v576 = vsub.s32 0, %v575
      %v577 = vsel %vm571, %v576, %v575
      %vm578 = vcmp.ne.s32.totalorder %v535, 0
      %vm579 = vcmp.ne.s32.totalorder %v542, 0
      %vm580 = vcmp.ne.s32.totalorder %v549, 0
      %vm581 = vcmp.ne.s32.totalorder %v556, 0
      %vm582 = vcmp.ne.s32.totalorder %v563, 0
      %vm583 = vcmp.ne.s32.totalorder %v570, 0
      %vm584 = vcmp.ne.s32.totalorder %v577, 0
      %vm585 = vcmp.lt.s32.totalorder %v535, 0
      %vm586 = vcmp.lt.s32.totalorder %v542, 0
      %vm587 = vcmp.lt.s32.totalorder %v549, 0
      %vm588 = vcmp.lt.s32.totalorder %v556, 0
      %vm589 = vcmp.lt.s32.totalorder %v563, 0
      %vm590 = vcmp.lt.s32.totalorder %v570, 0
      %vm591 = vcmp.lt.s32.totalorder %v577, 0
      %vm592 = vmand %vm585, %vm578
      %vm593 = vmand %vm586, %vm579
      %vm594 = vmand %vm587, %vm580
      %vm595 = vmand %vm588, %vm581
      %vm596 = vmand %vm589, %vm582
      %vm597 = vmand %vm590, %vm583
      %vm598 = vmand %vm591, %vm584
      %v599 = vadd.s32 %v535, 8
      %v600 = vadd.s32 %v542, 8
      %v601 = vadd.s32 %v549, 8
      %v602 = vadd.s32 %v556, 8
      %v603 = vadd.s32 %v563, 8
      %v604 = vadd.s32 %v570, 8
      %v605 = vadd.s32 %v577, 8
      %v606 = vsel %vm592, %v599, %v535
      %v607 = vsel %vm593, %v600, %v542
      %v608 = vsel %vm594, %v601, %v549
      %v609 = vsel %vm595, %v602, %v556
      %v610 = vsel %vm596, %v603, %v563
      %v611 = vsel %vm597, %v604, %v570
      %v612 = vsel %vm598, %v605, %v577
      %vm613 = vcmp.lt.s32.totalorder %v606, 7
      %vm614 = vcmp.lt.s32.totalorder %v607, 7
      %vm615 = vcmp.lt.s32.totalorder %v608, 7
      %vm616 = vcmp.lt.s32.totalorder %v609, 7
      %vm617 = vcmp.lt.s32.totalorder %v610, 7
      %vm618 = vcmp.lt.s32.totalorder %v611, 7
      %vm619 = vcmp.lt.s32.totalorder %v612, 7
      %v620 = vsel %vm613, %v455, 0.0
      %v621 = vsel %vm614, %v458, 0.0
      %v622 = vsel %vm615, %v463, 0.0
      %v623 = vsel %vm616, %v466, 0.0
      %v624 = vsel %vm617, %v471, 0.0
      %v625 = vsel %vm618, %v474, 0.0
      %v626 = vsel %vm619, %v479, 0.0
      %vm627 = vcmask 64512
      %v628 = vsel %vm627, %v620, 0.0
      %v629 = vsel %vm627, %v621, 0.0
      %v630 = vadd.f32 %v628, %v629
      %v631 = vsel %vm627, %v622, 0.0
      %v632 = vadd.f32 %v630, %v631
      %v633 = vsel %vm627, %v623, 0.0
      %v634 = vadd.f32 %v632, %v633
      %v635 = vsel %vm627, %v624, 0.0
      %v636 = vadd.f32 %v634, %v635
      %v637 = vsel %vm627, %v625, 0.0
      %v638 = vadd.f32 %v636, %v637
      %v639 = vsel %vm627, %v626, 0.0
      %v640 = vadd.f32 %v638, %v639
      %v641 = vrot.slane %v640, 4
      %v642 = vadd.f32 %v640, %v641
      %v643 = vrot.slane %v642, 2
      %v644 = vadd.f32 %v642, %v643
      %v645 = vrot.slane %v644, 1
      %v646 = vadd.f32 %v644, %v645
      %v647 = vmul.f32 %v620, %v455
      %v648 = vmul.f32 %v621, %v458
      %v649 = vmul.f32 %v622, %v463
      %v650 = vmul.f32 %v623, %v466
      %v651 = vmul.f32 %v624, %v471
      %v652 = vmul.f32 %v625, %v474
      %v653 = vmul.f32 %v626, %v479
      %v654 = vsel %vm627, %v647, 0.0
      %v655 = vsel %vm627, %v648, 0.0
      %v656 = vadd.f32 %v654, %v655
      %v657 = vsel %vm627, %v649, 0.0
      %v658 = vadd.f32 %v656, %v657
      %v659 = vsel %vm627, %v650, 0.0
      %v660 = vadd.f32 %v658, %v659
      %v661 = vsel %vm627, %v651, 0.0
      %v662 = vadd.f32 %v660, %v661
      %v663 = vsel %vm627, %v652, 0.0
      %v664 = vadd.f32 %v662, %v663
      %v665 = vsel %vm627, %v653, 0.0
      %v666 = vadd.f32 %v664, %v665
      %v667 = vrot.slane %v666, 4
      %v668 = vadd.f32 %v666, %v667
      %v669 = vrot.slane %v668, 2
      %v670 = vadd.f32 %v668, %v669
      %v671 = vrot.slane %v670, 1
      %v672 = vadd.f32 %v670, %v671
      %v673 = vld [vmem:[%s205] sm:$0x3]
      %vm674 = vcmask 1040384
      %v675 = vsel %vm674, %v646, %v672
      %v676 = vadd.f32 %v673, %v675
      %vm677 = vcmask 58368
      %678 = vst.msk [vmem:[%s205] sm:$0x3] %vm677, %v676
      %s679 = sadd.s32 %s19, %s20
      %p680 = scmp.lt.s32.totalorder %s679, 1
      %s681 = scalar_select %p680, %s679, 1
      %s682 = smul.addr %s681, 7
      %s683 = smul.addr %s682, 4
      %s684 = scalar_lea.vmem %s2, %s683
      %p685 = scmp.lt.s32.totalorder %s19, 1
      %s686 = scalar_select %p685, %s19, 1
      %s687 = smul.addr %s686, 2
      %s688 = scalar_lea.vmem %s3, %s687
      // Predicated region
      $region33: #{unet_skip_connection_eblock4.2} parent=27 // pred_check
        %p689 = pneg %p96
      $region34: #{unet_skip_connection_eblock4.2} parent=27 // pred_check_branch
        %691 = sbr.rel (%p689) target = $region36
      $region35: #{unet_skip_connection_eblock4.2} parent=27 // pred_region
        %s692 = sadd.s32 %s19, %s20
      $region36: #{unet_skip_connection_eblock4.2} parent=27 // pred_fallthru
        _
      // Predicated region
      $region37: #{unet_skip_connection_eblock4.2} parent=27 // pred_check
        %p693 = pneg %p122
      $region38: #{unet_skip_connection_eblock4.2} parent=27 // pred_check_branch
        %695 = sbr.rel (%p693) target = $region40
      $region39: #{unet_skip_connection_eblock4.2} parent=27 // pred_region
        _
      $region40: #{unet_skip_connection_eblock4.2} parent=27 // pred_fallthru
        _
    $region28: #{unet_skip_connection_eblock4.2} parent=5 // pred_fallthru
      _
    %p696 = scmp.le.s32.totalorder 2, %s10
    // Predicated region
    $region41: #{unet_skip_connection_eblock4.2} parent=5 // pred_check
      %p697 = pneg %p696
    $region42: #{unet_skip_connection_eblock4.2} parent=5 // pred_check_branch
      %699 = sbr.rel (%p697) target = $region44
    $region43: #{unet_skip_connection_eblock4.2} parent=5 // pred_region
      %s700 = ssub.s32 %s10, 2
      // Predicated region
      $region45: #{unet_skip_connection_eblock4.2} parent=43 // pred_check
        %p701 = pneg %p102
      $region46: #{unet_skip_connection_eblock4.2} parent=43 // pred_check_branch
        %703 = sbr.rel (%p701) target = $region48
      $region47: #{unet_skip_connection_eblock4.2} parent=43 // pred_region
        %s704 = sadd.s32 %s21, %s22
        %p705 = scmp.lt.s32.totalorder %s704, 1
        %s706 = scalar_select %p705, %s704, 1
        %s707 = smul.addr %s706, 7
        %s708 = smul.addr %s707, 4
        %s709 = scalar_lea.vmem %s2, %s708
      $region48: #{unet_skip_connection_eblock4.2} parent=43 // pred_fallthru
        _
      // Predicated region
      $region49: #{unet_skip_connection_eblock4.2} parent=43 // pred_check
        %p710 = pneg %p128
      $region50: #{unet_skip_connection_eblock4.2} parent=43 // pred_check_branch
        %712 = sbr.rel (%p710) target = $region52
      $region51: #{unet_skip_connection_eblock4.2} parent=43 // pred_region
        %p713 = scmp.lt.s32.totalorder %s21, 1
        %s714 = scalar_select %p713, %s21, 1
        %s715 = smul.addr %s714, 2
        %s716 = scalar_lea.vmem %s3, %s715
      $region52: #{unet_skip_connection_eblock4.2} parent=43 // pred_fallthru
        _
    $region44: #{unet_skip_connection_eblock4.2} parent=5 // pred_fallthru
      _
  $region6: #{unet_skip_connection_eblock4.2} parent=0 // loop_footer
    %s14 = sadd.s32 1, %s10
  $region7: #{unet_skip_connection_eblock4.2} parent=0 // loop_footer_branch
    %9 = sbr.rel target = $region3
  $region8: #{unet_skip_connection_eblock4.2} parent=0 // loop_exit
    _

</llo_original>
